<compile_context>
chip_gen: v6e
topology: v6e:2x2x1
jax: 0.10.0
libtpu: 0.0.40
codegen_flags: <defaults>
</compile_context>

<pallas_src>
import functools

import jax
import jax.numpy as jnp
from jax.experimental import pallas as pl
from jax.experimental.pallas import tpu as pltpu

ALPHA = 2.0


def _round_up(x, m):
    return (x + m - 1) // m * m


def _cdiv(a, b):
    return (a + b - 1) // b


def _cer_severity_loss_kernel(logits_ref, targets_ref, weights_ref, out_ref,
                              acc_ref, *, inv_n, tn, n_rows, tiles_per_core,
                              sub_mult):
    """One (tn, C) row tile of weighted cross entropy, accumulated per core.

    logits_ref : (tn, C)        native dtype VMEM (cast to f32 in-register)
    targets_ref: (rows_pad, 1)  i32 VMEM, grid-resident (class indices)
    weights_ref: (rows_pad, 1)  f32 VMEM, grid-resident (1 + alpha*cer)
    out_ref    : (1, tn, 1)     f32 VMEM (per-core partial, written at finalize)
    acc_ref    : (tn, 1)        f32 VMEM scratch (per-core resident accumulator)
    """
    c = pl.program_id(0)          # core / parallel axis
    i = pl.program_id(1)          # row-tile / reduction axis

    @pl.when(i == 0)
    def _init():
        acc_ref[...] = jnp.zeros_like(acc_ref)

    # global (unclamped) tile index and first global row of this tile
    t = c * tiles_per_core + i
    r0 = pl.multiple_of(t * tn, sub_mult)

    logits = logits_ref[...].astype(jnp.float32)                     # (tn, C)
    tgt = targets_ref[pl.ds(r0, tn), :]                              # (tn, 1)
    w = weights_ref[pl.ds(r0, tn), :]                                # (tn, 1)

    # numerically stable log-softmax cross entropy per row
    m = jnp.max(logits, axis=-1, keepdims=True)                      # (tn, 1)
    lse = m + jnp.log(jnp.sum(jnp.exp(logits - m), axis=-1, keepdims=True))
    col = jax.lax.broadcasted_iota(jnp.int32, logits.shape, 1)       # (tn, C)
    tgt_logit = jnp.sum(jnp.where(col == tgt, logits, 0.0),
                        axis=-1, keepdims=True)                      # (tn, 1)
    ce = lse - tgt_logit                                             # (tn, 1)

    # mask rows past the real batch (partial last tile, duplicated/clamped
    # tiles on the other core).  jnp.where is a select, so garbage / NaN rows
    # from unspecified block padding cannot leak into the sum.
    row = r0 + jax.lax.broadcasted_iota(jnp.int32, (tn, 1), 0)       # (tn, 1)
    acc_ref[...] += jnp.where(row < n_rows, ce * w, 0.0)

    @pl.when(i == tiles_per_core - 1)
    def _finalize():
        # global 1/N applied here; cross-sublane reduce deferred to the wrapper
        out_ref[...] = (acc_ref[...] * inv_n).reshape(1, tn, 1)


def cer_severity_loss(logits, targets, ids, speaker_cer_table,
                      alpha=ALPHA, row_tile=None):
    """JAX wrapper.

    logits : (N, C) floating (bf16/f16/f32 — kept in native dtype for the DMA)
    targets: (N,)   int     class indices
    ids    : (N,)   int     speaker ids (indices into speaker_cer_table)
    speaker_cer_table: (num_speakers,) float32 CER per speaker
    row_tile: optional row-tile override (rounded up to the sublane multiple)
    """
    N, C = logits.shape
    dtype = logits.dtype
    bytes_per = jnp.dtype(dtype).itemsize
    sub_mult = max(8, 32 // bytes_per)            # 8 f32, 16 bf16/f16, 32 int8

    # glue: dict lookup -> table gather, then per-sample severity weight
    cer = jnp.take(speaker_cer_table, ids.astype(jnp.int32))          # (N,)
    weights = (1.0 + alpha * cer).astype(jnp.float32).reshape(N, 1)   # (N, 1)
    tgt = targets.astype(jnp.int32).reshape(N, 1)                     # (N, 1)

    # --- tiling choices --------------------------------------------------
    c_vmem = _round_up(C, 128)                    # lane-padded VMEM footprint
    if row_tile is None:
        budget_f32 = 4 * 1024 * 1024              # ~4 MiB f32-equiv per tile
        tn = budget_f32 // max(1, c_vmem * 4)
        tn = max(sub_mult, (tn // sub_mult) * sub_mult)
    else:
        tn = _round_up(max(int(row_tile), 1), sub_mult)
    tn = min(tn, _round_up(N, sub_mult))          # don't over-pad tiny batches

    num_tiles = _cdiv(N, tn)
    num_cores = 2 if num_tiles >= 2 else 1        # engages both TCs on v7x
    tiles_per_core = _cdiv(num_tiles, num_cores)
    total_tiles = num_cores * tiles_per_core
    rows_pad = total_tiles * tn

    # pad ONLY the tiny per-sample columns (zero weight / class 0); logits stay
    # unpadded in HBM — partial / duplicated blocks are masked in-kernel.
    tgt_p = jnp.pad(tgt, ((0, rows_pad - N), (0, 0)))
    w_p = jnp.pad(weights, ((0, rows_pad - N), (0, 0)))

    kernel = functools.partial(
        _cer_severity_loss_kernel, inv_n=1.0 / N, tn=tn, n_rows=N,
        tiles_per_core=tiles_per_core, sub_mult=sub_mult)

    # explicit scoped-VMEM limit: raises v5e's 16 MiB default for the bigger
    # tiles, stays under v7x's 64 MiB physical.
    tile_native = tn * c_vmem * bytes_per
    tile_f32 = tn * c_vmem * 4
    aux_cols = 2 * 2 * rows_pad * 128 * 4         # resident target/weight cols
    out_bytes = 2 * num_cores * tn * 128 * 4
    vmem_needed = 2 * tile_native + 3 * tile_f32 + aux_cols + out_bytes + (1 << 20)
    vmem_limit = int(min(max(vmem_needed, 32 << 20), 48 << 20))

    cost = pl.CostEstimate(
        flops=5 * N * C,
        transcendentals=N * C,
        bytes_accessed=N * C * bytes_per + N * 8 + num_cores * tn * 4,
    )

    # clamp the block index so a duplicated tile on the second core never
    # addresses past the (unpadded) logits array; its contribution is masked
    # to zero in-kernel via the global-row check.
    last_tile = num_tiles - 1

    out = pl.pallas_call(
        kernel,
        out_shape=jax.ShapeDtypeStruct((num_cores, tn, 1), jnp.float32),
        grid=(num_cores, tiles_per_core),
        in_specs=[
            pl.BlockSpec(
                (tn, C),
                lambda c, i: (jnp.minimum(c * tiles_per_core + i, last_tile), 0)),
            pl.BlockSpec((rows_pad, 1), lambda c, i: (0, 0)),   # resident targets
            pl.BlockSpec((rows_pad, 1), lambda c, i: (0, 0)),   # resident weights
        ],
        out_specs=pl.BlockSpec((1, tn, 1), lambda c, i: (c, 0, 0)),
        scratch_shapes=[pltpu.VMEM((tn, 1), jnp.float32)],
        compiler_params=pltpu.CompilerParams(
            dimension_semantics=("parallel", "arbitrary"),
            vmem_limit_bytes=vmem_limit),
        cost_estimate=cost,
    )(logits, tgt_p, w_p)

    # padded / masked rows contributed exactly 0; inv_n already applied.
    return jnp.sum(out)


def _reference(logits, targets, ids, speaker_cer_table, alpha=ALPHA):
    """Pure-JAX reference (mirrors PyTorch CrossEntropyLoss(reduction='none'))."""
    logp = jax.nn.log_softmax(logits.astype(jnp.float32), axis=-1)
    ce = -jnp.take_along_axis(logp, targets[:, None].astype(jnp.int32), axis=-1)[:, 0]
    w = 1.0 + alpha * jnp.take(speaker_cer_table, ids.astype(jnp.int32))
    return jnp.mean(ce * w)


if __name__ == "__main__":
    key = jax.random.PRNGKey(0)
    k_logits, k_tgt, k_ids = jax.random.split(key, 3)

    N, C = 20, 32          # batch=20 (not a multiple of 8), num_classes=32
    NUM_SPEAKERS = 10

    logits = jax.random.normal(k_logits, (N, C), dtype=jnp.float32)
    targets = jax.random.randint(k_tgt, (N,), 0, C, dtype=jnp.int32)
    ids = jax.random.randint(k_ids, (N,), 0, NUM_SPEAKERS, dtype=jnp.int32)

    # deterministic synthetic speaker_cer table (CER in [0, 0.9])
    speaker_cer_table = jnp.linspace(0.0, 0.9, NUM_SPEAKERS, dtype=jnp.float32)

    ref = _reference(logits, targets, ids, speaker_cer_table)

    # 1) default tiling, f32 logits, single tile (no padding anywhere)
    loss = cer_severity_loss(logits, targets, ids, speaker_cer_table)
    loss = jax.block_until_ready(loss)
    assert jnp.allclose(loss, ref, rtol=1e-5, atol=1e-5), (loss, ref)

    # 2) forced multi-tile path: row_tile=8 -> 3 real tiles, dual-core grid
    #    (2 x 2) with one duplicated/masked tile and a partial last tile.
    loss_tiled = cer_severity_loss(logits, targets, ids, speaker_cer_table,
                                   row_tile=8)
    loss_tiled = jax.block_until_ready(loss_tiled)
    assert jnp.allclose(loss_tiled, ref, rtol=1e-5, atol=1e-5), (loss_tiled, ref)

    # 3) native-bf16 ingestion (no wrapper-side f32 copy; cast happens in-kernel)
    logits_bf16 = logits.astype(jnp.bfloat16)
    loss_bf16 = cer_severity_loss(logits_bf16, targets, ids, speaker_cer_table)
    loss_bf16 = jax.block_until_ready(loss_bf16)
    ref_bf16 = _reference(logits_bf16, targets, ids, speaker_cer_table)
    assert jnp.allclose(loss_bf16, ref_bf16, rtol=1e-4, atol=1e-4), (loss_bf16, ref_bf16)

    # 4) non-128-aligned class dim + multi-tile + dual-core split
    N2, C2 = 100, 200
    k2a, k2b, k2c = jax.random.split(jax.random.PRNGKey(1), 3)
    logits2 = jax.random.normal(k2a, (N2, C2), dtype=jnp.float32)
    targets2 = jax.random.randint(k2b, (N2,), 0, C2, dtype=jnp.int32)
    ids2 = jax.random.randint(k2c, (N2,), 0, NUM_SPEAKERS, dtype=jnp.int32)
    loss2 = cer_severity_loss(logits2, targets2, ids2, speaker_cer_table,
                              row_tile=32)
    loss2 = jax.block_until_ready(loss2)
    ref2 = _reference(logits2, targets2, ids2, speaker_cer_table)
    assert jnp.allclose(loss2, ref2, rtol=1e-5, atol=1e-5), (loss2, ref2)

    print("KERNEL_OK")
</pallas_src>

<mosaic_0001>
module attributes {stable_mosaic.version = 11 : i64} {
  func.func @_cer_severity_loss_kernel(%arg0: i32, %arg1: i32, %arg2: memref<24x32xf32, #tpu.memory_space<vmem>>, %arg3: memref<24x1xi32, #tpu.memory_space<vmem>>, %arg4: memref<24x1xf32, #tpu.memory_space<vmem>>, %arg5: memref<1x24x1xf32, #tpu.memory_space<vmem>>, %arg6: memref<24x1xf32, #tpu.memory_space<vmem>>) attributes {dimension_semantics = [#tpu.dimension_semantics<parallel>, #tpu.dimension_semantics<arbitrary>], iteration_bounds = array<i64: 1, 1>, scalar_prefetch = 0 : i64, scratch_operands = 1 : i64, tpu.core_type = #tpu.core_type<tc>, window_params = [{transform_indices = @transform_0, window_bounds = array<i64: 24, 32>}, {pipeline_mode = #tpu.pipeline_mode<synchronous>, transform_indices = @transform_1, window_bounds = array<i64: 24, 1>}, {pipeline_mode = #tpu.pipeline_mode<synchronous>, transform_indices = @transform_2, window_bounds = array<i64: 24, 1>}, {transform_indices = @transform_3, window_bounds = array<i64: 1, 24, 1>}]} {
    %c0_i32 = arith.constant 0 : i32
    %0 = arith.cmpi eq, %arg1, %c0_i32 : i32
    %1 = arith.extui %0 : i1 to i32
    %c0_i32_0 = arith.constant 0 : i32
    %2 = arith.cmpi ne, %1, %c0_i32_0 : i32
    scf.if %2 {
      %cst_14 = arith.constant 0.000000e+00 : f32
      %43 = vector.broadcast %cst_14 : f32 to vector<24x1xf32>
      %c0_15 = arith.constant 0 : index
      %c0_16 = arith.constant 0 : index
      %44 = vector.load %arg6[%c0_15, %c0_16] : memref<24x1xf32, #tpu.memory_space<vmem>>, vector<24x1xf32>
      tpu.vector_store %arg6[%c0_15, %c0_16], %43 {strides = array<i32>} : memref<24x1xf32, #tpu.memory_space<vmem>>, vector<24x1xf32>,
    } else {
    }
    %c1_i32 = arith.constant 1 : i32
    %3 = arith.muli %arg0, %c1_i32 : i32
    %4 = arith.addi %3, %arg1 : i32
    %c24_i32 = arith.constant 24 : i32
    %5 = arith.muli %4, %c24_i32 : i32
    %6 = tpu.assume_multiple %5, 8 : i32
    %c0 = arith.constant 0 : index
    %c0_1 = arith.constant 0 : index
    %7 = vector.load %arg2[%c0, %c0_1] : memref<24x32xf32, #tpu.memory_space<vmem>>, vector<24x32xf32>
    %8 = arith.index_cast %6 : i32 to index
    %c0_2 = arith.constant 0 : index
    %9 = vector.load %arg3[%8, %c0_2] : memref<24x1xi32, #tpu.memory_space<vmem>>, vector<24x1xi32>
    %10 = arith.index_cast %6 : i32 to index
    %c0_3 = arith.constant 0 : index
    %11 = vector.load %arg4[%10, %c0_3] : memref<24x1xf32, #tpu.memory_space<vmem>>, vector<24x1xf32>
    %cst = arith.constant dense<0xFF800000> : vector<24xf32>
    %12 = vector.multi_reduction <maximumf>, %7, %cst [1] : vector<24x32xf32> to vector<24xf32>
    %13 = vector.shape_cast %12 : vector<24xf32> to vector<24x1xf32>
    %14 = vector.broadcast %13 : vector<24x1xf32> to vector<24x32xf32>
    %15 = arith.subf %7, %14 : vector<24x32xf32>
    %16 = math.exp %15 : vector<24x32xf32>
    %cst_4 = arith.constant dense<0.000000e+00> : vector<24xf32>
    %17 = vector.multi_reduction <add>, %16, %cst_4 [1] : vector<24x32xf32> to vector<24xf32>
    %18 = vector.shape_cast %17 : vector<24xf32> to vector<24x1xf32>
    %19 = math.log %18 : vector<24x1xf32>
    %20 = arith.addf %13, %19 : vector<24x1xf32>
    %21 = tpu.iota {dimensions = array<i32: 1>} : vector<24x32xi32>
    %22 = vector.broadcast %9 : vector<24x1xi32> to vector<24x32xi32>
    %23 = arith.cmpi eq, %21, %22 : vector<24x32xi32>
    %cst_5 = arith.constant 0.000000e+00 : f32
    %24 = vector.broadcast %cst_5 : f32 to vector<24x32xf32>
    %25 = arith.select %23, %7, %24 : vector<24x32xi1>, vector<24x32xf32>
    %cst_6 = arith.constant dense<0.000000e+00> : vector<24xf32>
    %26 = vector.multi_reduction <add>, %25, %cst_6 [1] : vector<24x32xf32> to vector<24xf32>
    %27 = vector.shape_cast %26 : vector<24xf32> to vector<24x1xf32>
    %28 = arith.subf %20, %27 : vector<24x1xf32>
    %29 = tpu.iota {dimensions = array<i32: 0>} : vector<24x1xi32>
    %30 = vector.broadcast %6 : i32 to vector<24x1xi32>
    %31 = arith.addi %30, %29 : vector<24x1xi32>
    %c0_7 = arith.constant 0 : index
    %c0_8 = arith.constant 0 : index
    %32 = vector.load %arg6[%c0_7, %c0_8] : memref<24x1xf32, #tpu.memory_space<vmem>>, vector<24x1xf32>
    %c20_i32 = arith.constant 20 : i32
    %33 = vector.broadcast %c20_i32 : i32 to vector<24x1xi32>
    %34 = arith.cmpi slt, %31, %33 : vector<24x1xi32>
    %35 = arith.mulf %28, %11 : vector<24x1xf32>
    %cst_9 = arith.constant 0.000000e+00 : f32
    %36 = vector.broadcast %cst_9 : f32 to vector<24x1xf32>
    %37 = arith.select %34, %35, %36 : vector<24x1xi1>, vector<24x1xf32>
    %38 = arith.addf %32, %37 : vector<24x1xf32>
    %c0_10 = arith.constant 0 : index
    %c0_11 = arith.constant 0 : index
    %39 = vector.load %arg6[%c0_10, %c0_11] : memref<24x1xf32, #tpu.memory_space<vmem>>, vector<24x1xf32>
    tpu.vector_store %arg6[%c0_10, %c0_11], %38 {strides = array<i32>} : memref<24x1xf32, #tpu.memory_space<vmem>>, vector<24x1xf32>,
    %c0_i32_12 = arith.constant 0 : i32
    %40 = arith.cmpi eq, %arg1, %c0_i32_12 : i32
    %41 = arith.extui %40 : i1 to i32
    %c0_i32_13 = arith.constant 0 : i32
    %42 = arith.cmpi ne, %41, %c0_i32_13 : i32
    scf.if %42 {
      %c0_14 = arith.constant 0 : index
      %c0_15 = arith.constant 0 : index
      %43 = vector.load %arg6[%c0_14, %c0_15] : memref<24x1xf32, #tpu.memory_space<vmem>>, vector<24x1xf32>
      %cst_16 = arith.constant 5.000000e-02 : f32
      %44 = vector.broadcast %cst_16 : f32 to vector<24x1xf32>
      %45 = arith.mulf %43, %44 : vector<24x1xf32>
      %46 = vector.shape_cast %45 : vector<24x1xf32> to vector<1x24x1xf32>
      %c0_17 = arith.constant 0 : index
      %c0_18 = arith.constant 0 : index
      %c0_19 = arith.constant 0 : index
      %47 = vector.load %arg5[%c0_17, %c0_18, %c0_19] : memref<1x24x1xf32, #tpu.memory_space<vmem>>, vector<1x24x1xf32>
      tpu.vector_store %arg5[%c0_17, %c0_18, %c0_19], %46 {strides = array<i32>} : memref<1x24x1xf32, #tpu.memory_space<vmem>>, vector<1x24x1xf32>,
    } else {
    }
    return
  }
  func.func @transform_0(%arg0: i32, %arg1: i32) -> (i32, i32) {
    %c1_i32 = arith.constant 1 : i32
    %0 = arith.muli %arg0, %c1_i32 : i32
    %1 = arith.addi %0, %arg1 : i32
    %c0_i32 = arith.constant 0 : i32
    %2 = arith.minsi %1, %c0_i32 : i32
    %c0_i32_0 = arith.constant 0 : i32
    %c0_i32_1 = arith.constant 0 : i32
    return %2, %c0_i32_0 : i32, i32
  }
  func.func @transform_1(%arg0: i32, %arg1: i32) -> (i32, i32) {
    %c0_i32 = arith.constant 0 : i32
    %c0_i32_0 = arith.constant 0 : i32
    %c0_i32_1 = arith.constant 0 : i32
    return %c0_i32, %c0_i32_0 : i32, i32
  }
  func.func @transform_2(%arg0: i32, %arg1: i32) -> (i32, i32) {
    %c0_i32 = arith.constant 0 : i32
    %c0_i32_0 = arith.constant 0 : i32
    %c0_i32_1 = arith.constant 0 : i32
    return %c0_i32, %c0_i32_0 : i32, i32
  }
  func.func @transform_3(%arg0: i32, %arg1: i32) -> (i32, i32, i32) {
    %c0_i32 = arith.constant 0 : i32
    %c0_i32_0 = arith.constant 0 : i32
    %c0_i32_1 = arith.constant 0 : i32
    return %arg0, %c0_i32, %c0_i32_0 : i32, i32, i32
  }
}

</mosaic_0001>

<llo_original>
// kernel: tpu_custom_call.1
$region0: #{tpu_custom_call.1}
  #allocation0 [shape = 'u32[]', space=smem, size = 0x4, offset = 0x4, fixed_abs, tag = 'smem constant byte address 0x4 - core index']
  #allocation1 [shape = 'u32[144,128]{1,0:T(1,128)}', space=vmem, size = 0x12000, scoped, tag = 'internal scratch']
  #allocation2 [shape = 'f32[24,1]{1,0:T(8,128)}', space=vmem, size = 0x3000, scoped, tag = 'scratch operand']
  %s0 = inlined_call_operand.vmem [shape: f32[20,32], index: 0, kind: input, shape index: {}]
  %s1 = inlined_call_operand.vmem [shape: s32[24,1], index: 1, kind: input, shape index: {}]
  %s2 = inlined_call_operand.vmem [shape: f32[24,1], index: 2, kind: input, shape index: {}]
  %s3 = inlined_call_operand.vmem [shape: f32[1,24,1], index: 3, kind: output, shape index: {}]
  %s4 = sld [smem:[#allocation0]]
  $region30: #{tpu_custom_call.1} parent=0
    _
  %s6 = ssub.s32 1, %s4
  %s7 = scalar_select 0, %s6, %s4
  // Predicated region
  $region2: #{tpu_custom_call.1} parent=0 // pred_check
    _
  $region3: #{tpu_custom_call.1} parent=0 // pred_check_branch
    %9 = sbr.rel (0) target = $region5
  $region4: #{tpu_custom_call.1} parent=0 // pred_region
    %s10 = sadd.s32 0, 0
    %p11 = scmp.lt.s32.totalorder %s10, 0
    %s12 = scalar_select %p11, %s10, 0
    %s13 = smul.u32 3, %s12
    %p14 = scmp.lt.s32.totalorder %s13, 2
    %s15 = scalar_select %p14, %s13, 2
    %s16 = smul.addr %s15, 8
    %s17 = scalar_lea.vmem %s0, %s16
    %s18 = sadd.s32 0, 0
    %p19 = scmp.lt.s32.totalorder %s18, 0
    %s20 = scalar_select %p19, %s18, 0
    %s21 = smul.u32 3, %s20
  $region5: #{tpu_custom_call.1} parent=0 // pred_fallthru
    _
  // Predicated region
  $region6: #{tpu_custom_call.1} parent=0 // pred_check
    _
  $region7: #{tpu_custom_call.1} parent=0 // pred_check_branch
    %23 = sbr.rel (0) target = $region9
  $region8: #{tpu_custom_call.1} parent=0 // pred_region
    _
  $region9: #{tpu_custom_call.1} parent=0 // pred_fallthru
    _
  // Predicated region
  $region10: #{tpu_custom_call.1} parent=0 // pred_check
    _
  $region11: #{tpu_custom_call.1} parent=0 // pred_check_branch
    %25 = sbr.rel (0) target = $region13
  $region12: #{tpu_custom_call.1} parent=0 // pred_region
    _
  $region13: #{tpu_custom_call.1} parent=0 // pred_fallthru
    _
  %s26 = sadd.s32 0, 0
  %p27 = scmp.lt.s32.totalorder %s26, 0
  %s28 = scalar_select %p27, %s26, 0
  %s29 = smul.u32 3, %s28
  %p30 = scmp.lt.s32.totalorder %s29, 2
  %s31 = scalar_select %p30, %s29, 2
  %s32 = smul.addr %s31, 8
  %s33 = scalar_lea.vmem %s0, %s32
  %s34 = sadd.s32 0, 0
  %p35 = scmp.lt.s32.totalorder %s34, 0
  %s36 = scalar_select %p35, %s34, 0
  %s37 = smul.u32 3, %s36
  %p38 = scmp.lt.s32.totalorder %s37, 2
  %s39 = scalar_select %p38, %s37, 2
  %s40 = smul.addr %s39, 8
  %s41 = scalar_lea.vmem %s0, %s40
  %s42 = sadd.s32 0, 0
  %p43 = scmp.lt.s32.totalorder %s42, 0
  %s44 = scalar_select %p43, %s42, 0
  %s45 = smul.u32 3, %s44
  %p46 = scmp.eq.s32.totalorder 0, 0
  // Predicated region
  $region14: #{tpu_custom_call.1} parent=0 // pred_check
    %p47 = pneg %p46
  $region15: #{tpu_custom_call.1} parent=0 // pred_check_branch
    %49 = sbr.rel (%p47) target = $region17
  $region16: #{tpu_custom_call.1} parent=0 // pred_region
    %vm50 = vcmask 7168
    %51 = vst.msk [vmem:[#allocation2] sm:$0xff] %vm50, 0.0
    %52 = vst.msk [vmem:[#allocation2 + $0x8] sm:$0xff] %vm50, 0.0
    %53 = vst.msk [vmem:[#allocation2 + $0x10] sm:$0xff] %vm50, 0.0
  $region17: #{tpu_custom_call.1} parent=0 // pred_fallthru
    _
  %s54 = sadd.s32 0, 0
  %s55 = smul.u32 %s54, 24
  %v56 = vld [vmem:[%s41] sm:$0xff]
  %v57 = vld [vmem:[%s41 + $0x8] sm:$0xff]
  %v58 = vld [vmem:[%s41 + $0x10] sm:$0xff]
  %s59 = scalar_lea.vmem %s1, %s55
  %v60 = vld [vmem:[%s59] sm:$0xff]
  %v61 = vld [vmem:[%s59 + $0x8] sm:$0xff]
  %v62 = vld [vmem:[%s59 + $0x10] sm:$0xff]
  %s63 = scalar_lea.vmem %s2, %s55
  %v64 = vld [vmem:[%s63] sm:$0xff]
  %v65 = vld [vmem:[%s63 + $0x8] sm:$0xff]
  %v66 = vld [vmem:[%s63 + $0x10] sm:$0xff]
  %vm67 = vcmask 261120
  %v68 = vsel %vm67, %v56, -inf
  %69 = vmax.xlane.f32.xlu0 %v68
  %v70 = vpop.xlane.xlu0 %69
  %v71 = vsel %vm67, %v57, -inf
  %72 = vmax.xlane.f32.xlu0 %v71
  %v73 = vpop.xlane.xlu0 %72
  %v74 = vsel %vm67, %v58, -inf
  %75 = vmax.xlane.f32.xlu0 %v74
  %v76 = vpop.xlane.xlu0 %75
  %v77 = vsub.f32 %v56, %v70
  %v78 = vsub.f32 %v57, %v73
  %v79 = vsub.f32 %v58, %v76
  %v80 = vmul.f32 %v77, 1.442695
  %v81 = vpow.pop %v80
  %v82 = vmul.f32 %v78, 1.442695
  %v83 = vpow.pop %v82
  %v84 = vmul.f32 %v79, 1.442695
  %v85 = vpow.pop %v84
  %v86 = vsel %vm67, %v81, 0.0
  %87 = vadd.xlane.f32.xlu0 %v86
  %v88 = vpop.xlane.xlu0 %87
  %v89 = vsel %vm67, %v83, 0.0
  %90 = vadd.xlane.f32.xlu0 %v89
  %v91 = vpop.xlane.xlu0 %90
  %v92 = vsel %vm67, %v85, 0.0
  %93 = vadd.xlane.f32.xlu0 %v92
  %v94 = vpop.xlane.xlu0 %93
  %v95 = vlog2.pop %v88
  %v96 = vmul.f32 %v95, 0.6931472
  %v97 = vlog2.pop %v91
  %v98 = vmul.f32 %v97, 0.6931472
  %v99 = vlog2.pop %v94
  %v100 = vmul.f32 %v99, 0.6931472
  %v101 = vadd.f32 %v70, %v96
  %v102 = vadd.f32 %v73, %v98
  %v103 = vadd.f32 %v76, %v100
  %v104 = vlaneseq
  %v105 = vand.u32 %v104, 127
  %106 = vset.pattern.permute.xlu0 0
  %107 = vperm.xlu0 %106, %v60
  %v108 = vpop.permute.xlu0 %107
  %109 = vset.pattern.permute.xlu0 0
  %110 = vperm.xlu0 %109, %v61
  %v111 = vpop.permute.xlu0 %110
  %112 = vset.pattern.permute.xlu0 0
  %113 = vperm.xlu0 %112, %v62
  %v114 = vpop.permute.xlu0 %113
  %vm115 = vcmp.eq.s32.totalorder %v105, %v108
  %vm116 = vcmp.eq.s32.totalorder %v105, %v111
  %vm117 = vcmp.eq.s32.totalorder %v105, %v114
  %v118 = vsel %vm115, %v56, 0.0
  %v119 = vsel %vm116, %v57, 0.0
  %v120 = vsel %vm117, %v58, 0.0
  %v121 = vsel %vm67, %v118, 0.0
  %122 = vadd.xlane.f32.xlu0 %v121
  %v123 = vpop.xlane.xlu0 %122
  %v124 = vsel %vm67, %v119, 0.0
  %125 = vadd.xlane.f32.xlu0 %v124
  %v126 = vpop.xlane.xlu0 %125
  %v127 = vsel %vm67, %v120, 0.0
  %128 = vadd.xlane.f32.xlu0 %v127
  %v129 = vpop.xlane.xlu0 %128
  %v130 = vsub.f32 %v101, %v123
  %v131 = vsub.f32 %v102, %v126
  %v132 = vsub.f32 %v103, %v129
  %v133 = vlaneseq
  %v134 = vshrl.u32 %v133, 7
  %v135 = vadd.s32 %v134, 8
  %v136 = vadd.s32 %v134, 16
  %v137 = vstv %s55
  %v138 = vadd.s32 %v137, %v134
  %v139 = vadd.s32 %v137, %v135
  %v140 = vadd.s32 %v137, %v136
  %v141 = vld [vmem:[#allocation2] sm:$0xff]
  %v142 = vld [vmem:[#allocation2 + $0x8] sm:$0xff]
  %v143 = vld [vmem:[#allocation2 + $0x10] sm:$0xff]
  %vm144 = vcmp.lt.s32.totalorder %v138, 20
  %vm145 = vcmp.lt.s32.totalorder %v139, 20
  %vm146 = vcmp.lt.s32.totalorder %v140, 20
  %v147 = vmul.f32 %v130, %v64
  %v148 = vmul.f32 %v131, %v65
  %v149 = vmul.f32 %v132, %v66
  %v150 = vsel %vm144, %v147, 0.0
  %v151 = vsel %vm145, %v148, 0.0
  %v152 = vsel %vm146, %v149, 0.0
  %v153 = vadd.f32 %v141, %v150
  %v154 = vadd.f32 %v142, %v151
  %v155 = vadd.f32 %v143, %v152
  %vm156 = vcmask 7168
  %157 = vst.msk [vmem:[#allocation2] sm:$0xff] %vm156, %v153
  %158 = vst.msk [vmem:[#allocation2 + $0x8] sm:$0xff] %vm156, %v154
  %159 = vst.msk [vmem:[#allocation2 + $0x10] sm:$0xff] %vm156, %v155
  // Predicated region
  $region18: #{tpu_custom_call.1} parent=0 // pred_check
    %p160 = pneg %p46
  $region19: #{tpu_custom_call.1} parent=0 // pred_check_branch
    %162 = sbr.rel (%p160) target = $region21
  $region20: #{tpu_custom_call.1} parent=0 // pred_region
    %v163 = vld [vmem:[#allocation2] sm:$0xff]
    %v164 = vld [vmem:[#allocation2 + $0x8] sm:$0xff]
    %v165 = vld [vmem:[#allocation2 + $0x10] sm:$0xff]
    %v166 = vmul.f32 %v163, 0.05
    %v167 = vmul.f32 %v164, 0.05
    %v168 = vmul.f32 %v165, 0.05
    %169 = vst.msk [vmem:[%s3] sm:$0xff] %vm156, %v166
    %170 = vst.msk [vmem:[%s3 + $0x8] sm:$0xff] %vm156, %v167
    %171 = vst.msk [vmem:[%s3 + $0x10] sm:$0xff] %vm156, %v168
  $region21: #{tpu_custom_call.1} parent=0 // pred_fallthru
    _
  // Predicated region
  $region22: #{tpu_custom_call.1} parent=0 // pred_check
    _
  $region23: #{tpu_custom_call.1} parent=0 // pred_check_branch
    %173 = sbr.rel (0) target = $region25
  $region24: #{tpu_custom_call.1} parent=0 // pred_region
    _
  $region25: #{tpu_custom_call.1} parent=0 // pred_fallthru
    _
  // Predicated region
  $region26: #{tpu_custom_call.1} parent=0 // pred_check
    _
  $region27: #{tpu_custom_call.1} parent=0 // pred_check_branch
    %175 = sbr.rel (0) target = $region29
  $region28: #{tpu_custom_call.1} parent=0 // pred_region
    _
  $region29: #{tpu_custom_call.1} parent=0 // pred_fallthru
    _

</llo_original>
